<compile_context>
chip_gen: v5e
topology: v5e:2x2
jax: 0.10.0
libtpu: 0.0.40
codegen_flags: <defaults>
</compile_context>

<pallas_src>
import functools

import jax
import jax.numpy as jnp
from jax.experimental import pallas as pl
from jax.experimental.pallas import tpu as pltpu

LRELU_SLOPE = 0.01          # PyTorch nn.LeakyReLU default negative_slope
LANE = 128
SUBLANE = 8
TILE_B_MAX = 4096           # keeps 2x(x+out) buffers + intermediates << 64 MiB (v7x)
MEGACORE_MIN_BATCH = 256    # above this, force >=2 grid steps (v7x has 2 TCs)


def _round_up(n, m):
    return ((n + m - 1) // m) * m


def mlp_kernel(*refs):
    # refs = (x_ref, w1, b1, w2, b2, ..., wL, bL, o_ref)
    x_ref = refs[0]
    o_ref = refs[-1]
    param_refs = refs[1:-1]
    n_layers = len(param_refs) // 2

    h = x_ref[...].astype(jnp.float32)
    for li in range(n_layers):
        w_ref = param_refs[2 * li]
        b_ref = param_refs[2 * li + 1]
        w = w_ref[...].astype(jnp.float32)
        b = b_ref[...].astype(jnp.float32)
        k_dim = w_ref.shape[0]  # static

        if k_dim <= SUBLANE:
            # Tiny contraction (e.g. din=2): VPU broadcasted multiply-adds.
            # Avoids an MXU push where K would be >98% zero padding.
            h_new = h[:, 0:1] * w[0:1, :] + b
            for k in range(1, k_dim):
                h_new = h_new + h[:, k:k + 1] * w[k:k + 1, :]
            h = h_new
        else:
            h = jnp.dot(h, w, preferred_element_type=jnp.float32) + b

        if li < n_layers - 1:  # LeakyReLU after every layer except the last
            h = jnp.maximum(h, LRELU_SLOPE * h)

    o_ref[...] = h.astype(o_ref.dtype)


def xavier_uniform(key, fan_in, fan_out, dtype=jnp.float32):
    limit = jnp.sqrt(6.0 / (fan_in + fan_out))
    # Stored already transposed: shape (in, out).
    return jax.random.uniform(key, (fan_in, fan_out), dtype, -limit, limit)


def init_mlp_params(key, din=2, dout=10, num_filters=32, depth=3):
    """Returns a flat list [w1, b1, w2, b2, ...] matching the torch module."""
    dims = [din] + [num_filters] * depth + [dout]
    params = []
    for i in range(len(dims) - 1):
        key, sub = jax.random.split(key)
        w = xavier_uniform(sub, dims[i], dims[i + 1])
        b = jnp.full((1, dims[i + 1]), 0.01, jnp.float32)  # bias.fill_(0.01)
        params += [w, b]
    return params


def _padded_bytes(shape, itemsize=4):
    r, c = shape
    return _round_up(r, SUBLANE) * _round_up(c, LANE) * itemsize


@functools.partial(jax.jit, static_argnames=("tile_b",))
def mlp_forward(x, params, *, tile_b=2048):
    B, din = x.shape
    dout = params[-1].shape[-1]
    n_layers = len(params) // 2
    max_width = max(p.shape[-1] for p in params)

    # Generation-safe tile cap (v7x has 64 MiB physical VMEM).
    tile_b = max(SUBLANE, min(int(tile_b), TILE_B_MAX))

    # --- batch tiling: no divisibility requirement; pad batch in the wrapper.
    b_pad = _round_up(B, SUBLANE)
    tile = min(tile_b, b_pad)
    if b_pad >= MEGACORE_MIN_BATCH:
        # Ensure at least 2 grid steps so the "parallel" axis shards across
        # both v7x TensorCores instead of collapsing to a single step.
        tile = min(tile, _round_up((b_pad + 1) // 2, SUBLANE))
    tile = _round_up(tile, SUBLANE)
    b_pad = _round_up(b_pad, tile)
    if b_pad != B:
        x = jnp.pad(x, ((0, b_pad - B), (0, 0)))
    grid = (b_pad // tile,)

    # Unpadded (lane-narrow) output: dout equals the full last array dim, so
    # the (8,128) block rule holds; HBM writeback is 40 B/row, not 512 B/row.
    x_spec = pl.BlockSpec((tile, din), lambda i: (i, 0))
    out_spec = pl.BlockSpec((tile, dout), lambda i: (i, 0))
    # Weights / biases: full arrays, same block every grid step (stay resident).
    param_specs = [pl.BlockSpec(p.shape, lambda i: (0, 0)) for p in params]

    # Explicit, generation-safe VMEM cap: double-buffered x/out blocks,
    # resident params counted once, plus per-layer intermediates + headroom.
    vmem_needed = 2 * _padded_bytes((tile, din)) + 2 * _padded_bytes((tile, dout))
    vmem_needed += sum(_padded_bytes(p.shape) for p in params)           # resident, 1x
    vmem_needed += (n_layers + 1) * _padded_bytes((tile, max_width))     # activations
    vmem_limit = int(min(max(2 * vmem_needed + (8 << 20), 32 << 20), 48 << 20))

    out = pl.pallas_call(
        mlp_kernel,
        out_shape=jax.ShapeDtypeStruct((b_pad, dout), x.dtype),
        grid_spec=pltpu.PrefetchScalarGridSpec(
            num_scalar_prefetch=0,
            grid=grid,
            in_specs=[x_spec] + param_specs,
            out_specs=out_spec,
        ),
        compiler_params=pltpu.CompilerParams(
            dimension_semantics=("parallel",),
            vmem_limit_bytes=vmem_limit,
        ),
    )(x, *params)

    if b_pad != B:
        out = out[:B]
    return out


def mlp_reference(x, params):
    h = x.astype(jnp.float32)
    n_layers = len(params) // 2
    for li in range(n_layers):
        w, b = params[2 * li], params[2 * li + 1]
        h = h @ w + b
        if li < n_layers - 1:
            h = jnp.where(h > 0, h, LRELU_SLOPE * h)
    return h.astype(x.dtype)


if __name__ == "__main__":
    key = jax.random.PRNGKey(0)
    kp, kx = jax.random.split(key)

    din, dout, num_filters, depth = 2, 10, 32, 3
    batch = 64  # small batch -> wrapper collapses to a single grid step

    params = init_mlp_params(kp, din=din, dout=dout,
                             num_filters=num_filters, depth=depth)
    x = jax.random.normal(kx, (batch, din), jnp.float32)

    out = mlp_forward(x, params)
    jax.block_until_ready(out)

    ref = mlp_reference(x, params)
    assert out.shape == (batch, dout)
    assert jnp.allclose(out, ref, atol=1e-5, rtol=1e-5), "mismatch vs reference"
    print("KERNEL_OK")
</pallas_src>

<mosaic_0001>
module attributes {stable_mosaic.version = 11 : i64} {
  func.func @mlp_kernel(%arg0: i32, %arg1: memref<64x2xf32, #tpu.memory_space<vmem>>, %arg2: memref<2x32xf32, #tpu.memory_space<vmem>>, %arg3: memref<1x32xf32, #tpu.memory_space<vmem>>, %arg4: memref<32x32xf32, #tpu.memory_space<vmem>>, %arg5: memref<1x32xf32, #tpu.memory_space<vmem>>, %arg6: memref<32x32xf32, #tpu.memory_space<vmem>>, %arg7: memref<1x32xf32, #tpu.memory_space<vmem>>, %arg8: memref<32x10xf32, #tpu.memory_space<vmem>>, %arg9: memref<1x10xf32, #tpu.memory_space<vmem>>, %arg10: memref<64x10xf32, #tpu.memory_space<vmem>>) attributes {dimension_semantics = [#tpu.dimension_semantics<parallel>], iteration_bounds = array<i64: 1>, scalar_prefetch = 0 : i64, scratch_operands = 0 : i64, tpu.core_type = #tpu.core_type<tc>, window_params = [{transform_indices = @transform_0, window_bounds = array<i64: 64, 2>}, {pipeline_mode = #tpu.pipeline_mode<synchronous>, transform_indices = @transform_1, window_bounds = array<i64: 2, 32>}, {pipeline_mode = #tpu.pipeline_mode<synchronous>, transform_indices = @transform_2, window_bounds = array<i64: 1, 32>}, {pipeline_mode = #tpu.pipeline_mode<synchronous>, transform_indices = @transform_3, window_bounds = array<i64: 32, 32>}, {pipeline_mode = #tpu.pipeline_mode<synchronous>, transform_indices = @transform_4, window_bounds = array<i64: 1, 32>}, {pipeline_mode = #tpu.pipeline_mode<synchronous>, transform_indices = @transform_5, window_bounds = array<i64: 32, 32>}, {pipeline_mode = #tpu.pipeline_mode<synchronous>, transform_indices = @transform_6, window_bounds = array<i64: 1, 32>}, {pipeline_mode = #tpu.pipeline_mode<synchronous>, transform_indices = @transform_7, window_bounds = array<i64: 32, 10>}, {pipeline_mode = #tpu.pipeline_mode<synchronous>, transform_indices = @transform_8, window_bounds = array<i64: 1, 10>}, {transform_indices = @transform_9, window_bounds = array<i64: 64, 10>}]} {
    %c0 = arith.constant 0 : index
    %c0_0 = arith.constant 0 : index
    %0 = vector.load %arg1[%c0, %c0_0] : memref<64x2xf32, #tpu.memory_space<vmem>>, vector<64x2xf32>
    %c0_1 = arith.constant 0 : index
    %c0_2 = arith.constant 0 : index
    %1 = vector.load %arg2[%c0_1, %c0_2] : memref<2x32xf32, #tpu.memory_space<vmem>>, vector<2x32xf32>
    %c0_3 = arith.constant 0 : index
    %c0_4 = arith.constant 0 : index
    %2 = vector.load %arg3[%c0_3, %c0_4] : memref<1x32xf32, #tpu.memory_space<vmem>>, vector<1x32xf32>
    %3 = vector.extract_strided_slice %0 {offsets = [0, 0], sizes = [64, 1], strides = [1, 1]} : vector<64x2xf32> to vector<64x1xf32>
    %4 = vector.extract_strided_slice %1 {offsets = [0, 0], sizes = [1, 32], strides = [1, 1]} : vector<2x32xf32> to vector<1x32xf32>
    %5 = vector.broadcast %3 : vector<64x1xf32> to vector<64x32xf32>
    %6 = vector.broadcast %4 : vector<1x32xf32> to vector<64x32xf32>
    %7 = arith.mulf %5, %6 : vector<64x32xf32>
    %8 = vector.broadcast %2 : vector<1x32xf32> to vector<64x32xf32>
    %9 = arith.addf %7, %8 : vector<64x32xf32>
    %10 = vector.extract_strided_slice %0 {offsets = [0, 1], sizes = [64, 1], strides = [1, 1]} : vector<64x2xf32> to vector<64x1xf32>
    %11 = vector.extract_strided_slice %1 {offsets = [1, 0], sizes = [1, 32], strides = [1, 1]} : vector<2x32xf32> to vector<1x32xf32>
    %12 = vector.broadcast %10 : vector<64x1xf32> to vector<64x32xf32>
    %13 = vector.broadcast %11 : vector<1x32xf32> to vector<64x32xf32>
    %14 = arith.mulf %12, %13 : vector<64x32xf32>
    %15 = arith.addf %9, %14 : vector<64x32xf32>
    %cst = arith.constant 0.00999999977 : f32
    %16 = vector.broadcast %cst : f32 to vector<64x32xf32>
    %17 = arith.mulf %16, %15 : vector<64x32xf32>
    %18 = arith.maximumf %15, %17 : vector<64x32xf32>
    %c0_5 = arith.constant 0 : index
    %c0_6 = arith.constant 0 : index
    %19 = vector.load %arg4[%c0_5, %c0_6] : memref<32x32xf32, #tpu.memory_space<vmem>>, vector<32x32xf32>
    %c0_7 = arith.constant 0 : index
    %c0_8 = arith.constant 0 : index
    %20 = vector.load %arg5[%c0_7, %c0_8] : memref<1x32xf32, #tpu.memory_space<vmem>>, vector<1x32xf32>
    %cst_9 = arith.constant dense<0.000000e+00> : vector<64x32xf32>
    %21 = tpu.matmul %18, %19, %cst_9 {dimension_numbers = #tpu.dot_dimension_numbers<[1], [0], [0], [1], [0, 0, 1, 1], [], []>} : vector<64x32xf32>, vector<32x32xf32>, vector<64x32xf32> -> vector<64x32xf32>
    %22 = vector.broadcast %20 : vector<1x32xf32> to vector<64x32xf32>
    %23 = arith.addf %21, %22 : vector<64x32xf32>
    %cst_10 = arith.constant 0.00999999977 : f32
    %24 = vector.broadcast %cst_10 : f32 to vector<64x32xf32>
    %25 = arith.mulf %24, %23 : vector<64x32xf32>
    %26 = arith.maximumf %23, %25 : vector<64x32xf32>
    %c0_11 = arith.constant 0 : index
    %c0_12 = arith.constant 0 : index
    %27 = vector.load %arg6[%c0_11, %c0_12] : memref<32x32xf32, #tpu.memory_space<vmem>>, vector<32x32xf32>
    %c0_13 = arith.constant 0 : index
    %c0_14 = arith.constant 0 : index
    %28 = vector.load %arg7[%c0_13, %c0_14] : memref<1x32xf32, #tpu.memory_space<vmem>>, vector<1x32xf32>
    %cst_15 = arith.constant dense<0.000000e+00> : vector<64x32xf32>
    %29 = tpu.matmul %26, %27, %cst_15 {dimension_numbers = #tpu.dot_dimension_numbers<[1], [0], [0], [1], [0, 0, 1, 1], [], []>} : vector<64x32xf32>, vector<32x32xf32>, vector<64x32xf32> -> vector<64x32xf32>
    %30 = vector.broadcast %28 : vector<1x32xf32> to vector<64x32xf32>
    %31 = arith.addf %29, %30 : vector<64x32xf32>
    %cst_16 = arith.constant 0.00999999977 : f32
    %32 = vector.broadcast %cst_16 : f32 to vector<64x32xf32>
    %33 = arith.mulf %32, %31 : vector<64x32xf32>
    %34 = arith.maximumf %31, %33 : vector<64x32xf32>
    %c0_17 = arith.constant 0 : index
    %c0_18 = arith.constant 0 : index
    %35 = vector.load %arg8[%c0_17, %c0_18] : memref<32x10xf32, #tpu.memory_space<vmem>>, vector<32x10xf32>
    %c0_19 = arith.constant 0 : index
    %c0_20 = arith.constant 0 : index
    %36 = vector.load %arg9[%c0_19, %c0_20] : memref<1x10xf32, #tpu.memory_space<vmem>>, vector<1x10xf32>
    %cst_21 = arith.constant dense<0.000000e+00> : vector<64x10xf32>
    %37 = tpu.matmul %34, %35, %cst_21 {dimension_numbers = #tpu.dot_dimension_numbers<[1], [0], [0], [1], [0, 0, 1, 1], [], []>} : vector<64x32xf32>, vector<32x10xf32>, vector<64x10xf32> -> vector<64x10xf32>
    %38 = vector.broadcast %36 : vector<1x10xf32> to vector<64x10xf32>
    %39 = arith.addf %37, %38 : vector<64x10xf32>
    %c0_22 = arith.constant 0 : index
    %c0_23 = arith.constant 0 : index
    %40 = vector.load %arg10[%c0_22, %c0_23] : memref<64x10xf32, #tpu.memory_space<vmem>>, vector<64x10xf32>
    tpu.vector_store %arg10[%c0_22, %c0_23], %39 {strides = array<i32>} : memref<64x10xf32, #tpu.memory_space<vmem>>, vector<64x10xf32>,
    return
  }
  func.func @transform_0(%arg0: i32) -> (i32, i32) {
    %c0_i32 = arith.constant 0 : i32
    %c0_i32_0 = arith.constant 0 : i32
    return %arg0, %c0_i32 : i32, i32
  }
  func.func @transform_1(%arg0: i32) -> (i32, i32) {
    %c0_i32 = arith.constant 0 : i32
    %c0_i32_0 = arith.constant 0 : i32
    %c0_i32_1 = arith.constant 0 : i32
    return %c0_i32, %c0_i32_0 : i32, i32
  }
  func.func @transform_2(%arg0: i32) -> (i32, i32) {
    %c0_i32 = arith.constant 0 : i32
    %c0_i32_0 = arith.constant 0 : i32
    %c0_i32_1 = arith.constant 0 : i32
    return %c0_i32, %c0_i32_0 : i32, i32
  }
  func.func @transform_3(%arg0: i32) -> (i32, i32) {
    %c0_i32 = arith.constant 0 : i32
    %c0_i32_0 = arith.constant 0 : i32
    %c0_i32_1 = arith.constant 0 : i32
    return %c0_i32, %c0_i32_0 : i32, i32
  }
  func.func @transform_4(%arg0: i32) -> (i32, i32) {
    %c0_i32 = arith.constant 0 : i32
    %c0_i32_0 = arith.constant 0 : i32
    %c0_i32_1 = arith.constant 0 : i32
    return %c0_i32, %c0_i32_0 : i32, i32
  }
  func.func @transform_5(%arg0: i32) -> (i32, i32) {
    %c0_i32 = arith.constant 0 : i32
    %c0_i32_0 = arith.constant 0 : i32
    %c0_i32_1 = arith.constant 0 : i32
    return %c0_i32, %c0_i32_0 : i32, i32
  }
  func.func @transform_6(%arg0: i32) -> (i32, i32) {
    %c0_i32 = arith.constant 0 : i32
    %c0_i32_0 = arith.constant 0 : i32
    %c0_i32_1 = arith.constant 0 : i32
    return %c0_i32, %c0_i32_0 : i32, i32
  }
  func.func @transform_7(%arg0: i32) -> (i32, i32) {
    %c0_i32 = arith.constant 0 : i32
    %c0_i32_0 = arith.constant 0 : i32
    %c0_i32_1 = arith.constant 0 : i32
    return %c0_i32, %c0_i32_0 : i32, i32
  }
  func.func @transform_8(%arg0: i32) -> (i32, i32) {
    %c0_i32 = arith.constant 0 : i32
    %c0_i32_0 = arith.constant 0 : i32
    %c0_i32_1 = arith.constant 0 : i32
    return %c0_i32, %c0_i32_0 : i32, i32
  }
  func.func @transform_9(%arg0: i32) -> (i32, i32) {
    %c0_i32 = arith.constant 0 : i32
    %c0_i32_0 = arith.constant 0 : i32
    return %arg0, %c0_i32 : i32, i32
  }
}

</mosaic_0001>

<llo_original>
// kernel: mlp_forward.1
$region0: #{mlp_forward.1}
  #allocation0 [shape = 'u32[]', space=smem, size = 0x4, offset = 0x4, fixed_abs, tag = 'smem constant byte address 0x4 - core index']
  #allocation1 [shape = 'u32[72,128]{1,0:T(1,128)}', space=vmem, size = 0x9000, scoped, tag = 'internal scratch']
  %s0 = inlined_call_operand.vmem [shape: f32[64,2], index: 0, kind: input, shape index: {}]
  %s1 = inlined_call_operand.vmem [shape: f32[2,32], index: 1, kind: input, shape index: {}]
  %s2 = inlined_call_operand.vmem [shape: f32[1,32], index: 2, kind: input, shape index: {}]
  %s3 = inlined_call_operand.vmem [shape: f32[32,32], index: 3, kind: input, shape index: {}]
  %s4 = inlined_call_operand.vmem [shape: f32[1,32], index: 4, kind: input, shape index: {}]
  %s5 = inlined_call_operand.vmem [shape: f32[32,32], index: 5, kind: input, shape index: {}]
  %s6 = inlined_call_operand.vmem [shape: f32[1,32], index: 6, kind: input, shape index: {}]
  %s7 = inlined_call_operand.vmem [shape: f32[32,10], index: 7, kind: input, shape index: {}]
  %s8 = inlined_call_operand.vmem [shape: f32[1,10], index: 8, kind: input, shape index: {}]
  %s9 = inlined_call_operand.vmem [shape: f32[64,10], index: 9, kind: output, shape index: {}]
  %s10 = sld [smem:[#allocation0]]
  $region46: #{mlp_forward.1} parent=0
    _
  %s12 = ssub.s32 1, %s10
  %s13 = scalar_select 0, %s12, %s10
  // Predicated region
  $region2: #{mlp_forward.1} parent=0 // pred_check
    _
  $region3: #{mlp_forward.1} parent=0 // pred_check_branch
    %15 = sbr.rel (0) target = $region5
  $region4: #{mlp_forward.1} parent=0 // pred_region
    _
  $region5: #{mlp_forward.1} parent=0 // pred_fallthru
    _
  // Predicated region
  $region6: #{mlp_forward.1} parent=0 // pred_check
    _
  $region7: #{mlp_forward.1} parent=0 // pred_check_branch
    %17 = sbr.rel (0) target = $region9
  $region8: #{mlp_forward.1} parent=0 // pred_region
    _
  $region9: #{mlp_forward.1} parent=0 // pred_fallthru
    _
  // Predicated region
  $region10: #{mlp_forward.1} parent=0 // pred_check
    _
  $region11: #{mlp_forward.1} parent=0 // pred_check_branch
    %19 = sbr.rel (0) target = $region13
  $region12: #{mlp_forward.1} parent=0 // pred_region
    _
  $region13: #{mlp_forward.1} parent=0 // pred_fallthru
    _
  // Predicated region
  $region14: #{mlp_forward.1} parent=0 // pred_check
    _
  $region15: #{mlp_forward.1} parent=0 // pred_check_branch
    %21 = sbr.rel (0) target = $region17
  $region16: #{mlp_forward.1} parent=0 // pred_region
    _
  $region17: #{mlp_forward.1} parent=0 // pred_fallthru
    _
  // Predicated region
  $region18: #{mlp_forward.1} parent=0 // pred_check
    _
  $region19: #{mlp_forward.1} parent=0 // pred_check_branch
    %23 = sbr.rel (0) target = $region21
  $region20: #{mlp_forward.1} parent=0 // pred_region
    _
  $region21: #{mlp_forward.1} parent=0 // pred_fallthru
    _
  // Predicated region
  $region22: #{mlp_forward.1} parent=0 // pred_check
    _
  $region23: #{mlp_forward.1} parent=0 // pred_check_branch
    %25 = sbr.rel (0) target = $region25
  $region24: #{mlp_forward.1} parent=0 // pred_region
    _
  $region25: #{mlp_forward.1} parent=0 // pred_fallthru
    _
  // Predicated region
  $region26: #{mlp_forward.1} parent=0 // pred_check
    _
  $region27: #{mlp_forward.1} parent=0 // pred_check_branch
    %27 = sbr.rel (0) target = $region29
  $region28: #{mlp_forward.1} parent=0 // pred_region
    _
  $region29: #{mlp_forward.1} parent=0 // pred_fallthru
    _
  // Predicated region
  $region30: #{mlp_forward.1} parent=0 // pred_check
    _
  $region31: #{mlp_forward.1} parent=0 // pred_check_branch
    %29 = sbr.rel (0) target = $region33
  $region32: #{mlp_forward.1} parent=0 // pred_region
    _
  $region33: #{mlp_forward.1} parent=0 // pred_fallthru
    _
  // Predicated region
  $region34: #{mlp_forward.1} parent=0 // pred_check
    _
  $region35: #{mlp_forward.1} parent=0 // pred_check_branch
    %31 = sbr.rel (0) target = $region37
  $region36: #{mlp_forward.1} parent=0 // pred_region
    _
  $region37: #{mlp_forward.1} parent=0 // pred_fallthru
    _
  %v32 = vld [vmem:[%s0] sm:$0xff]
  %v33 = vld [vmem:[%s0 + $0x8] sm:$0xff]
  %v34 = vld [vmem:[%s0 + $0x10] sm:$0xff]
  %v35 = vld [vmem:[%s0 + $0x18] sm:$0xff]
  %v36 = vld [vmem:[%s0 + $0x20] sm:$0xff]
  %v37 = vld [vmem:[%s0 + $0x28] sm:$0xff]
  %v38 = vld [vmem:[%s0 + $0x30] sm:$0xff]
  %v39 = vld [vmem:[%s0 + $0x38] sm:$0xff]
  %v40 = vld [vmem:[%s1] sm:$0x3]
  %v41 = vld [vmem:[%s2] sm:$0x1]
  %43 = vset.pattern.permute.xlu0 0
  %44 = vperm.xlu0 %43, %v32
  %v45 = vpop.permute.xlu0 %44
  %48 = vset.pattern.permute.xlu0 0
  %49 = vperm.xlu0 %48, %v33
  %v50 = vpop.permute.xlu0 %49
  %53 = vset.pattern.permute.xlu0 0
  %54 = vperm.xlu0 %53, %v34
  %v55 = vpop.permute.xlu0 %54
  %58 = vset.pattern.permute.xlu0 0
  %59 = vperm.xlu0 %58, %v35
  %v60 = vpop.permute.xlu0 %59
  %63 = vset.pattern.permute.xlu0 0
  %64 = vperm.xlu0 %63, %v36
  %v65 = vpop.permute.xlu0 %64
  %68 = vset.pattern.permute.xlu0 0
  %69 = vperm.xlu0 %68, %v37
  %v70 = vpop.permute.xlu0 %69
  %73 = vset.pattern.permute.xlu0 0
  %74 = vperm.xlu0 %73, %v38
  %v75 = vpop.permute.xlu0 %74
  %78 = vset.pattern.permute.xlu0 0
  %79 = vperm.xlu0 %78, %v39
  %v80 = vpop.permute.xlu0 %79
  %v82 = vperm.slane %v40, 0
  %v83 = vmul.f32 %v45, %v82
  %v84 = vmul.f32 %v50, %v82
  %v85 = vmul.f32 %v55, %v82
  %v86 = vmul.f32 %v60, %v82
  %v87 = vmul.f32 %v65, %v82
  %v88 = vmul.f32 %v70, %v82
  %v89 = vmul.f32 %v75, %v82
  %v90 = vmul.f32 %v80, %v82
  %v92 = vperm.slane %v41, 0
  %v94 = vadd.f32 %v83, %v92
  %v95 = vadd.f32 %v84, %v92
  %v96 = vadd.f32 %v85, %v92
  %v97 = vadd.f32 %v86, %v92
  %v98 = vadd.f32 %v87, %v92
  %v99 = vadd.f32 %v88, %v92
  %v100 = vadd.f32 %v89, %v92
  %v101 = vadd.f32 %v90, %v92
  %102 = vset.pattern.permute.xlu0 1
  %103 = vperm.xlu0 %102, %v32
  %v104 = vpop.permute.xlu0 %103
  %106 = vset.pattern.permute.xlu0 1
  %107 = vperm.xlu0 %106, %v33
  %v108 = vpop.permute.xlu0 %107
  %110 = vset.pattern.permute.xlu0 1
  %111 = vperm.xlu0 %110, %v34
  %v112 = vpop.permute.xlu0 %111
  %114 = vset.pattern.permute.xlu0 1
  %115 = vperm.xlu0 %114, %v35
  %v116 = vpop.permute.xlu0 %115
  %118 = vset.pattern.permute.xlu0 1
  %119 = vperm.xlu0 %118, %v36
  %v120 = vpop.permute.xlu0 %119
  %122 = vset.pattern.permute.xlu0 1
  %123 = vperm.xlu0 %122, %v37
  %v124 = vpop.permute.xlu0 %123
  %126 = vset.pattern.permute.xlu0 1
  %127 = vperm.xlu0 %126, %v38
  %v128 = vpop.permute.xlu0 %127
  %130 = vset.pattern.permute.xlu0 1
  %131 = vperm.xlu0 %130, %v39
  %v132 = vpop.permute.xlu0 %131
  %v134 = vperm.slane %v40, 1
  %v135 = vmul.f32 %v104, %v134
  %v136 = vmul.f32 %v108, %v134
  %v137 = vmul.f32 %v112, %v134
  %v138 = vmul.f32 %v116, %v134
  %v139 = vmul.f32 %v120, %v134
  %v140 = vmul.f32 %v124, %v134
  %v141 = vmul.f32 %v128, %v134
  %v142 = vmul.f32 %v132, %v134
  %v143 = vadd.f32 %v94, %v135
  %v144 = vadd.f32 %v95, %v136
  %v145 = vadd.f32 %v96, %v137
  %v146 = vadd.f32 %v97, %v138
  %v147 = vadd.f32 %v98, %v139
  %v148 = vadd.f32 %v99, %v140
  %v149 = vadd.f32 %v100, %v141
  %v150 = vadd.f32 %v101, %v142
  %v151 = vmul.f32 %v143, 0.01
  %v152 = vmul.f32 %v144, 0.01
  %v153 = vmul.f32 %v145, 0.01
  %v154 = vmul.f32 %v146, 0.01
  %v155 = vmul.f32 %v147, 0.01
  %v156 = vmul.f32 %v148, 0.01
  %v157 = vmul.f32 %v149, 0.01
  %v158 = vmul.f32 %v150, 0.01
  %v159 = vmax.f32 %v143, %v151
  %v160 = vmax.f32 %v144, %v152
  %v161 = vmax.f32 %v145, %v153
  %v162 = vmax.f32 %v146, %v154
  %v163 = vmax.f32 %v147, %v155
  %v164 = vmax.f32 %v148, %v156
  %v165 = vmax.f32 %v149, %v157
  %v166 = vmax.f32 %v150, %v158
  %v167 = vld [vmem:[%s3] sm:$0xff]
  %v168 = vld [vmem:[%s3 + $0x8] sm:$0xff]
  %v169 = vld [vmem:[%s3 + $0x10] sm:$0xff]
  %v170 = vld [vmem:[%s3 + $0x18] sm:$0xff]
  %v171 = vld [vmem:[%s4] sm:$0x1]
  %v173 = vperm.slane %v171, 0
  %vm175 = vcmask 261120
  %v177 = vsel %vm175, %v159, 0
  %v180 = vsel %vm175, %v160, 0
  %v183 = vsel %vm175, %v161, 0
  %v186 = vsel %vm175, %v162, 0
  %v189 = vsel %vm175, %v163, 0
  %v192 = vsel %vm175, %v164, 0
  %v195 = vsel %vm175, %v165, 0
  %v198 = vsel %vm175, %v166, 0
  %200 = vmatpush.msra.mxu0 0.0
  %201 = vmatpush.msra.mxu0 0.0
  %202 = vmatpush.msra.mxu0 0.0
  %203 = vmatpush.msra.mxu0 0.0
  %204 = vmatpush.msra.mxu0 0.0
  %205 = vmatpush.msra.mxu0 0.0
  %206 = vmatpush.msra.mxu0 0.0
  %207 = vmatpush.msra.mxu0 0.0
  %208 = vmatpush.msra.mxu0 0.0
  %209 = vmatpush.msra.mxu0 0.0
  %210 = vmatpush.msra.mxu0 0.0
  %211 = vmatpush.msra.mxu0 0.0
  %212 = vmatpush.msra.mxu0 %v170
  %213 = vmatpush.msra.mxu0 %v169
  %214 = vmatpush.msra.mxu0 %v168
  %215 = vmatpush.msra.mxu0 %v167
  %216 = vmatmul.f32.gmra.mxu0 %v177
  %v217 = vpop.f32.mrf.mxu0
  %v218 = vadd.f32 %v173, %v217
  %219 = vmatmul.f32.gmra.mxu0 %v180
  %v220 = vpop.f32.mrf.mxu0
  %v221 = vadd.f32 %v173, %v220
  %222 = vmatmul.f32.gmra.mxu0 %v183
  %v223 = vpop.f32.mrf.mxu0
  %v224 = vadd.f32 %v173, %v223
  %225 = vmatmul.f32.gmra.mxu0 %v186
  %v226 = vpop.f32.mrf.mxu0
  %v227 = vadd.f32 %v173, %v226
  %228 = vmatmul.f32.gmra.mxu0 %v189
  %v229 = vpop.f32.mrf.mxu0
  %v230 = vadd.f32 %v173, %v229
  %231 = vmatmul.f32.gmra.mxu0 %v192
  %v232 = vpop.f32.mrf.mxu0
  %v233 = vadd.f32 %v173, %v232
  %234 = vmatmul.f32.gmra.mxu0 %v195
  %v235 = vpop.f32.mrf.mxu0
  %v236 = vadd.f32 %v173, %v235
  %237 = vmatmul.f32.gmra.mxu0 %v198
  %v238 = vpop.f32.mrf.mxu0
  %v239 = vadd.f32 %v173, %v238
  %240 = vdwg.mxu0
  %v241 = vmul.f32 %v218, 0.01
  %v242 = vmul.f32 %v221, 0.01
  %v243 = vmul.f32 %v224, 0.01
  %v244 = vmul.f32 %v227, 0.01
  %v245 = vmul.f32 %v230, 0.01
  %v246 = vmul.f32 %v233, 0.01
  %v247 = vmul.f32 %v236, 0.01
  %v248 = vmul.f32 %v239, 0.01
  %v249 = vmax.f32 %v218, %v241
  %v250 = vmax.f32 %v221, %v242
  %v251 = vmax.f32 %v224, %v243
  %v252 = vmax.f32 %v227, %v244
  %v253 = vmax.f32 %v230, %v245
  %v254 = vmax.f32 %v233, %v246
  %v255 = vmax.f32 %v236, %v247
  %v256 = vmax.f32 %v239, %v248
  %v257 = vld [vmem:[%s5] sm:$0xff]
  %v258 = vld [vmem:[%s5 + $0x8] sm:$0xff]
  %v259 = vld [vmem:[%s5 + $0x10] sm:$0xff]
  %v260 = vld [vmem:[%s5 + $0x18] sm:$0xff]
  %v261 = vld [vmem:[%s6] sm:$0x1]
  %v263 = vperm.slane %v261, 0
  %v266 = vsel %vm175, %v249, 0
  %v269 = vsel %vm175, %v250, 0
  %v272 = vsel %vm175, %v251, 0
  %v275 = vsel %vm175, %v252, 0
  %v278 = vsel %vm175, %v253, 0
  %v281 = vsel %vm175, %v254, 0
  %v284 = vsel %vm175, %v255, 0
  %v287 = vsel %vm175, %v256, 0
  %289 = vmatpush.msra.mxu0 0.0
  %290 = vmatpush.msra.mxu0 0.0
  %291 = vmatpush.msra.mxu0 0.0
  %292 = vmatpush.msra.mxu0 0.0
  %293 = vmatpush.msra.mxu0 0.0
  %294 = vmatpush.msra.mxu0 0.0
  %295 = vmatpush.msra.mxu0 0.0
  %296 = vmatpush.msra.mxu0 0.0
  %297 = vmatpush.msra.mxu0 0.0
  %298 = vmatpush.msra.mxu0 0.0
  %299 = vmatpush.msra.mxu0 0.0
  %300 = vmatpush.msra.mxu0 0.0
  %301 = vmatpush.msra.mxu0 %v260
  %302 = vmatpush.msra.mxu0 %v259
  %303 = vmatpush.msra.mxu0 %v258
  %304 = vmatpush.msra.mxu0 %v257
  %305 = vmatmul.f32.gmra.mxu0 %v266
  %v306 = vpop.f32.mrf.mxu0
  %v307 = vadd.f32 %v263, %v306
  %308 = vmatmul.f32.gmra.mxu0 %v269
  %v309 = vpop.f32.mrf.mxu0
  %v310 = vadd.f32 %v263, %v309
  %311 = vmatmul.f32.gmra.mxu0 %v272
  %v312 = vpop.f32.mrf.mxu0
  %v313 = vadd.f32 %v263, %v312
  %314 = vmatmul.f32.gmra.mxu0 %v275
  %v315 = vpop.f32.mrf.mxu0
  %v316 = vadd.f32 %v263, %v315
  %317 = vmatmul.f32.gmra.mxu0 %v278
  %v318 = vpop.f32.mrf.mxu0
  %v319 = vadd.f32 %v263, %v318
  %320 = vmatmul.f32.gmra.mxu0 %v281
  %v321 = vpop.f32.mrf.mxu0
  %v322 = vadd.f32 %v263, %v321
  %323 = vmatmul.f32.gmra.mxu0 %v284
  %v324 = vpop.f32.mrf.mxu0
  %v325 = vadd.f32 %v263, %v324
  %326 = vmatmul.f32.gmra.mxu0 %v287
  %v327 = vpop.f32.mrf.mxu0
  %v328 = vadd.f32 %v263, %v327
  %329 = vdwg.mxu0
  %v330 = vmul.f32 %v307, 0.01
  %v331 = vmul.f32 %v310, 0.01
  %v332 = vmul.f32 %v313, 0.01
  %v333 = vmul.f32 %v316, 0.01
  %v334 = vmul.f32 %v319, 0.01
  %v335 = vmul.f32 %v322, 0.01
  %v336 = vmul.f32 %v325, 0.01
  %v337 = vmul.f32 %v328, 0.01
  %v338 = vmax.f32 %v307, %v330
  %v339 = vmax.f32 %v310, %v331
  %v340 = vmax.f32 %v313, %v332
  %v341 = vmax.f32 %v316, %v333
  %v342 = vmax.f32 %v319, %v334
  %v343 = vmax.f32 %v322, %v335
  %v344 = vmax.f32 %v325, %v336
  %v345 = vmax.f32 %v328, %v337
  %v346 = vld [vmem:[%s7] sm:$0xff]
  %v347 = vld [vmem:[%s7 + $0x8] sm:$0xff]
  %v348 = vld [vmem:[%s7 + $0x10] sm:$0xff]
  %v349 = vld [vmem:[%s7 + $0x18] sm:$0xff]
  %v350 = vld [vmem:[%s8] sm:$0x1]
  %v352 = vperm.slane %v350, 0
  %v355 = vsel %vm175, %v338, 0
  %v358 = vsel %vm175, %v339, 0
  %v361 = vsel %vm175, %v340, 0
  %v364 = vsel %vm175, %v341, 0
  %v367 = vsel %vm175, %v342, 0
  %v370 = vsel %vm175, %v343, 0
  %v373 = vsel %vm175, %v344, 0
  %v376 = vsel %vm175, %v345, 0
  %378 = vmatpush.msra.mxu0 0.0
  %379 = vmatpush.msra.mxu0 0.0
  %380 = vmatpush.msra.mxu0 0.0
  %381 = vmatpush.msra.mxu0 0.0
  %382 = vmatpush.msra.mxu0 0.0
  %383 = vmatpush.msra.mxu0 0.0
  %384 = vmatpush.msra.mxu0 0.0
  %385 = vmatpush.msra.mxu0 0.0
  %386 = vmatpush.msra.mxu0 0.0
  %387 = vmatpush.msra.mxu0 0.0
  %388 = vmatpush.msra.mxu0 0.0
  %389 = vmatpush.msra.mxu0 0.0
  %390 = vmatpush.msra.mxu0 %v349
  %391 = vmatpush.msra.mxu0 %v348
  %392 = vmatpush.msra.mxu0 %v347
  %393 = vmatpush.msra.mxu0 %v346
  %394 = vmatmul.f32.gmra.mxu0 %v355
  %v395 = vpop.f32.mrf.mxu0
  %v396 = vadd.f32 %v352, %v395
  %397 = vmatmul.f32.gmra.mxu0 %v358
  %v398 = vpop.f32.mrf.mxu0
  %v399 = vadd.f32 %v352, %v398
  %400 = vmatmul.f32.gmra.mxu0 %v361
  %v401 = vpop.f32.mrf.mxu0
  %v402 = vadd.f32 %v352, %v401
  %403 = vmatmul.f32.gmra.mxu0 %v364
  %v404 = vpop.f32.mrf.mxu0
  %v405 = vadd.f32 %v352, %v404
  %406 = vmatmul.f32.gmra.mxu0 %v367
  %v407 = vpop.f32.mrf.mxu0
  %v408 = vadd.f32 %v352, %v407
  %409 = vmatmul.f32.gmra.mxu0 %v370
  %v410 = vpop.f32.mrf.mxu0
  %v411 = vadd.f32 %v352, %v410
  %412 = vmatmul.f32.gmra.mxu0 %v373
  %v413 = vpop.f32.mrf.mxu0
  %v414 = vadd.f32 %v352, %v413
  %415 = vmatmul.f32.gmra.mxu0 %v376
  %v416 = vpop.f32.mrf.mxu0
  %v417 = vadd.f32 %v352, %v416
  %418 = vdwg.mxu0
  %vm419 = vcmask 80896
  %420 = vst.msk [vmem:[%s9] sm:$0xff] %vm419, %v396
  %421 = vst.msk [vmem:[%s9 + $0x8] sm:$0xff] %vm419, %v399
  %422 = vst.msk [vmem:[%s9 + $0x10] sm:$0xff] %vm419, %v402
  %423 = vst.msk [vmem:[%s9 + $0x18] sm:$0xff] %vm419, %v405
  %424 = vst.msk [vmem:[%s9 + $0x20] sm:$0xff] %vm419, %v408
  %425 = vst.msk [vmem:[%s9 + $0x28] sm:$0xff] %vm419, %v411
  %426 = vst.msk [vmem:[%s9 + $0x30] sm:$0xff] %vm419, %v414
  %427 = vst.msk [vmem:[%s9 + $0x38] sm:$0xff] %vm419, %v417
  // Predicated region
  $region38: #{mlp_forward.1} parent=0 // pred_check
    _
  $region39: #{mlp_forward.1} parent=0 // pred_check_branch
    %429 = sbr.rel (0) target = $region41
  $region40: #{mlp_forward.1} parent=0 // pred_region
    _
  $region41: #{mlp_forward.1} parent=0 // pred_fallthru
    _
  // Predicated region
  $region42: #{mlp_forward.1} parent=0 // pred_check
    _
  $region43: #{mlp_forward.1} parent=0 // pred_check_branch
    %431 = sbr.rel (0) target = $region45
  $region44: #{mlp_forward.1} parent=0 // pred_region
    _
  $region45: #{mlp_forward.1} parent=0 // pred_fallthru
    _

</llo_original>
